<compile_context>
chip_gen: v5e
topology: v5e:2x2
jax: 0.10.0
libtpu: 0.0.40
codegen_flags: <defaults>
</compile_context>

<pallas_src>
import functools

import jax
import jax.numpy as jnp
from jax import lax
from jax.experimental import pallas as pl
from jax.experimental.pallas import tpu as pltpu

_LANE = 128
_SUBLANE = 8


def _round_up(x, k):
    return ((x + k - 1) // k) * k


def _vmem_plan(n, m_pad, d_pad, in_bytes, out_bytes, general,
               budget_bytes=32 * 1024 * 1024):
    """Pick an n-tile so the resident VMEM working set stays under budget."""
    extra = 0
    if general:
        extra += 2 * d_pad * d_pad * in_bytes        # weight (double-buffered)
        extra += 2 * d_pad * in_bytes                # bias   (double-buffered)
        extra += m_pad * d_pad * in_bytes            # projected-h1 scratch
    fixed = 2 * m_pad * d_pad * in_bytes + extra     # h1 slab (double-buffered)
    per_row = (2 * d_pad * in_bytes                  # h2 tile (double-buffered)
               + 2 * m_pad * out_bytes               # out tile (double-buffered)
               + m_pad * 4)                          # f32 scores working set
    avail = max(budget_bytes - fixed, per_row * _SUBLANE)
    tile = min(int(avail // per_row), 256, _round_up(n, _SUBLANE))
    tile = max(_SUBLANE, (tile // _SUBLANE) * _SUBLANE)
    est = fixed + tile * per_row
    vmem_limit = int(min(max(est + (8 << 20), 16 << 20), 48 << 20))
    return tile, vmem_limit


def _finish(scores, lens_ref, apply_mask, out_dtype):
    """Optional length mask (-1e8 fill) + numerically stable softmax over m."""
    if apply_mask:
        length = lens_ref[pl.program_id(0)]
        col = lax.broadcasted_iota(jnp.int32, scores.shape, 1)
        scores = jnp.where(col < length, scores, jnp.float32(-1.0e8))
    mx = jnp.max(scores, axis=-1, keepdims=True)
    e = jnp.exp(scores - mx)
    denom = jnp.sum(e, axis=-1, keepdims=True)
    # EUP reciprocal + VPU multiply instead of a full divide pass.
    return (e * pl.reciprocal(denom, approx=False)).astype(out_dtype)


def _attn_dot_kernel(lens_ref, h1_ref, h2_ref, o_ref, *, apply_mask):
    h1 = h1_ref[0]          # (m_pad, d_pad), native dtype
    h2 = h2_ref[0]          # (tile_n, d_pad), native dtype
    # Contract the last (d) dims directly; no in-kernel transpose.
    scores = lax.dot_general(h2, h1, (((1,), (1,)), ((), ())),
                             preferred_element_type=jnp.float32)
    o_ref[0] = _finish(scores, lens_ref, apply_mask, o_ref.dtype)


def _attn_general_kernel(lens_ref, h1_ref, h2_ref, w_ref, bias_ref, o_ref,
                         h1p_ref, *, apply_mask):
    nj = pl.program_id(1)

    # Project h1 once per batch (at n-tile 0) and reuse it for all n-tiles.
    @pl.when(nj == 0)
    def _():
        h1 = h1_ref[0]                               # (m_pad, d_pad)
        w = w_ref[...]                               # (d_pad, d_pad) PyTorch (out,in)
        # h1 @ W^T via last-dim contraction (no transpose needed).
        h1p = lax.dot_general(h1, w, (((1,), (1,)), ((), ())),
                              preferred_element_type=jnp.float32)
        h1p = h1p + bias_ref[...].astype(jnp.float32)
        h1p_ref[...] = h1p.astype(h1p_ref.dtype)

    h2 = h2_ref[0]                                   # (tile_n, d_pad)
    scores = lax.dot_general(h2, h1p_ref[...], (((1,), (1,)), ((), ())),
                             preferred_element_type=jnp.float32)
    o_ref[0] = _finish(scores, lens_ref, apply_mask, o_ref.dtype)


def attn_score(h1, h2, h1_lens=None, *, method="dot", params=None,
               normalize=True, out_dtype=jnp.float32):
    """Pallas implementation of AttnScore.forward for method in {'dot','general'}."""
    del normalize  # both branches of the PyTorch module apply softmax.
    if method not in ("dot", "general"):
        # TODO(synk): 'concat' / 'tri_concat' (pairwise MLP over the repeated
        # b x n x m x d tensor) are not implemented in this kernel.
        raise NotImplementedError(f"method={method!r} not implemented")

    b, m, d = h1.shape
    _, n, _ = h2.shape
    general = method == "general"

    # Pad d (contraction dim) and m (output lane dim) to multiples of 128 for
    # lane-dense stores / MXU alignment; pad n to a multiple of the n-tile.
    # Zero padding keeps the dot products exact; padded m columns are removed
    # by the mask before the softmax and sliced off afterwards.
    m_pad = _round_up(m, _LANE)
    d_pad = _round_up(d, _LANE)

    in_bytes = jnp.dtype(h1.dtype).itemsize
    out_bytes = jnp.dtype(out_dtype).itemsize
    tile_n, vmem_limit = _vmem_plan(n, m_pad, d_pad, in_bytes, out_bytes,
                                    general)
    n_pad = _round_up(n, tile_n)
    num_n_tiles = n_pad // tile_n

    if d_pad != d or m_pad != m:
        h1 = jnp.pad(h1, ((0, 0), (0, m_pad - m), (0, d_pad - d)))
    if d_pad != d or n_pad != n:
        h2 = jnp.pad(h2, ((0, 0), (0, n_pad - n), (0, d_pad - d)))

    # Masking is statically skipped when no lengths are given and m needed no
    # padding; otherwise padded columns must be masked out anyway.
    apply_mask = (h1_lens is not None) or (m_pad != m)
    if h1_lens is None:
        lens = jnp.full((b,), m, dtype=jnp.int32)
    else:
        lens = h1_lens.astype(jnp.int32)

    out_shape = jax.ShapeDtypeStruct((b, n_pad, m_pad), out_dtype)
    h1_spec = pl.BlockSpec((1, m_pad, d_pad), lambda i, j, lens: (i, 0, 0))
    h2_spec = pl.BlockSpec((1, tile_n, d_pad), lambda i, j, lens: (i, j, 0))
    o_spec = pl.BlockSpec((1, tile_n, m_pad), lambda i, j, lens: (i, j, 0))

    if not general:
        kernel = functools.partial(_attn_dot_kernel, apply_mask=apply_mask)
        grid_spec = pltpu.PrefetchScalarGridSpec(
            num_scalar_prefetch=1, grid=(b, num_n_tiles),
            in_specs=[h1_spec, h2_spec], out_specs=o_spec)
        cp = pltpu.CompilerParams(
            dimension_semantics=("parallel", "parallel"),
            vmem_limit_bytes=vmem_limit)
        out = pl.pallas_call(kernel, out_shape=out_shape, grid_spec=grid_spec,
                             compiler_params=cp)(lens, h1, h2)
    else:
        w, bias = params
        if d_pad != d:
            w = jnp.pad(w, ((0, d_pad - d), (0, d_pad - d)))
            bias = jnp.pad(bias, ((0, d_pad - d),))
        w = w.astype(h1.dtype)
        bias2 = bias.reshape(1, d_pad).astype(jnp.float32)
        w_spec = pl.BlockSpec((d_pad, d_pad), lambda i, j, lens: (0, 0))
        b_spec = pl.BlockSpec((1, d_pad), lambda i, j, lens: (0, 0))
        kernel = functools.partial(_attn_general_kernel, apply_mask=apply_mask)
        grid_spec = pltpu.PrefetchScalarGridSpec(
            num_scalar_prefetch=1, grid=(b, num_n_tiles),
            in_specs=[h1_spec, h2_spec, w_spec, b_spec], out_specs=o_spec,
            scratch_shapes=[pltpu.VMEM((m_pad, d_pad), h1.dtype)])
        # n-tile axis is 'arbitrary': the projected-h1 scratch is written at
        # n-tile 0 and reused by the later n-tiles of the same batch.
        cp = pltpu.CompilerParams(
            dimension_semantics=("parallel", "arbitrary"),
            vmem_limit_bytes=vmem_limit)
        out = pl.pallas_call(kernel, out_shape=out_shape, grid_spec=grid_spec,
                             compiler_params=cp)(lens, h1, h2, w, bias2)

    if n_pad != n or m_pad != m:
        out = out[:, :n, :m]
    return out


def _reference(h1, h2, h1_lens=None, w=None, bias=None):
    h1f = h1.astype(jnp.float32)
    if w is not None:
        h1f = jnp.dot(h1f, w.T.astype(jnp.float32),
                      precision=lax.Precision.HIGHEST) + bias.astype(jnp.float32)
    align = jnp.einsum("bnd,bmd->bnm", h2.astype(jnp.float32), h1f,
                       precision=lax.Precision.HIGHEST)
    if h1_lens is not None:
        m = h1.shape[1]
        mask = (jnp.arange(m)[None, :] < h1_lens[:, None])[:, None, :]
        align = jnp.where(mask, align, -1.0e8)
    return jax.nn.softmax(align, axis=2)


if __name__ == "__main__":
    key = jax.random.PRNGKey(0)
    k1, k2, k3, k4 = jax.random.split(key, 4)

    bsz, seq_m, seq_n, dim = 2, 8, 8, 32
    h1 = jax.random.normal(k1, (bsz, seq_m, dim), dtype=jnp.float32)
    h2 = jax.random.normal(k2, (bsz, seq_n, dim), dtype=jnp.float32)
    h1_lens = jnp.array([5, 8], dtype=jnp.int32)

    # --- method='dot' (module default) with length mask ---
    out_dot = attn_score(h1, h2, h1_lens, method="dot")
    jax.block_until_ready(out_dot)
    ref_dot = _reference(h1, h2, h1_lens)
    assert out_dot.shape == (bsz, seq_n, seq_m)
    assert jnp.allclose(out_dot, ref_dot, atol=2e-5, rtol=2e-5)
    assert jnp.allclose(jnp.sum(out_dot, axis=2), 1.0, atol=1e-5)

    # --- method='dot' without a mask (h1_lens=None) ---
    out_nm = attn_score(h1, h2, None, method="dot")
    jax.block_until_ready(out_nm)
    ref_nm = _reference(h1, h2, None)
    assert out_nm.shape == (bsz, seq_n, seq_m)
    assert jnp.allclose(out_nm, ref_nm, atol=2e-5, rtol=2e-5)

    # --- method='general': Linear(d, d), weight/bias ~ U(-0.005, 0.005) ---
    w = jax.random.uniform(k3, (dim, dim), minval=-0.005, maxval=0.005,
                           dtype=jnp.float32)
    bvec = jax.random.uniform(k4, (dim,), minval=-0.005, maxval=0.005,
                              dtype=jnp.float32)
    out_gen = attn_score(h1, h2, h1_lens, method="general", params=(w, bvec))
    jax.block_until_ready(out_gen)
    ref_gen = _reference(h1, h2, h1_lens, w=w, bias=bvec)
    assert out_gen.shape == (bsz, seq_n, seq_m)
    assert jnp.allclose(out_gen, ref_gen, atol=2e-5, rtol=2e-5)
    assert jnp.allclose(jnp.sum(out_gen, axis=2), 1.0, atol=1e-5)

    print("KERNEL_OK")
</pallas_src>

<mosaic_0001>
module attributes {stable_mosaic.version = 11 : i64} {
  func.func @_attn_dot_kernel(%arg0: i32, %arg1: i32, %arg2: memref<2xi32, #tpu.memory_space<smem>>, %arg3: memref<1x128x128xf32, #tpu.memory_space<vmem>>, %arg4: memref<1x8x128xf32, #tpu.memory_space<vmem>>, %arg5: memref<1x8x128xf32, #tpu.memory_space<vmem>>) attributes {dimension_semantics = [#tpu.dimension_semantics<parallel>, #tpu.dimension_semantics<parallel>], iteration_bounds = array<i64: 2, 1>, scalar_prefetch = 1 : i64, scratch_operands = 0 : i64, tpu.core_type = #tpu.core_type<tc>, window_params = [{transform_indices = @transform_0, window_bounds = array<i64: 1, 128, 128>}, {transform_indices = @transform_1, window_bounds = array<i64: 1, 8, 128>}, {transform_indices = @transform_2, window_bounds = array<i64: 1, 8, 128>}]} {
    %c0 = arith.constant 0 : index
    %c0_0 = arith.constant 0 : index
    %c0_1 = arith.constant 0 : index
    %0 = vector.load %arg3[%c0, %c0_0, %c0_1] : memref<1x128x128xf32, #tpu.memory_space<vmem>>, vector<1x128x128xf32>
    %1 = vector.shape_cast %0 : vector<1x128x128xf32> to vector<128x128xf32>
    %c0_2 = arith.constant 0 : index
    %c0_3 = arith.constant 0 : index
    %c0_4 = arith.constant 0 : index
    %2 = vector.load %arg4[%c0_2, %c0_3, %c0_4] : memref<1x8x128xf32, #tpu.memory_space<vmem>>, vector<1x8x128xf32>
    %3 = vector.shape_cast %2 : vector<1x8x128xf32> to vector<8x128xf32>
    %cst = arith.constant dense<0.000000e+00> : vector<8x128xf32>
    %4 = tpu.matmul %3, %1, %cst {dimension_numbers = #tpu.dot_dimension_numbers<[1], [1], [0], [0], [0, 0, 1, 0], [], []>} : vector<8x128xf32>, vector<128x128xf32>, vector<8x128xf32> -> vector<8x128xf32>
    %5 = arith.index_cast %arg0 : i32 to index
    %6 = memref.load %arg2[%5] : memref<2xi32, #tpu.memory_space<smem>>
    %7 = tpu.iota {dimensions = array<i32: 1>} : vector<8x128xi32>
    %8 = vector.broadcast %6 : i32 to vector<8x128xi32>
    %9 = arith.cmpi slt, %7, %8 : vector<8x128xi32>
    %cst_5 = arith.constant -1.000000e+08 : f32
    %10 = vector.broadcast %cst_5 : f32 to vector<8x128xf32>
    %11 = arith.select %9, %4, %10 : vector<8x128xi1>, vector<8x128xf32>
    %cst_6 = arith.constant dense<0xFF800000> : vector<8xf32>
    %12 = vector.multi_reduction <maximumf>, %11, %cst_6 [1] : vector<8x128xf32> to vector<8xf32>
    %13 = vector.shape_cast %12 : vector<8xf32> to vector<8x1xf32>
    %14 = vector.broadcast %13 : vector<8x1xf32> to vector<8x128xf32>
    %15 = arith.subf %11, %14 : vector<8x128xf32>
    %16 = math.exp %15 : vector<8x128xf32>
    %cst_7 = arith.constant dense<0.000000e+00> : vector<8xf32>
    %17 = vector.multi_reduction <add>, %16, %cst_7 [1] : vector<8x128xf32> to vector<8xf32>
    %18 = vector.shape_cast %17 : vector<8xf32> to vector<8x1xf32>
    %19 = tpu.reciprocal %18 : vector<8x1xf32> -> vector<8x1xf32>
    %20 = vector.broadcast %19 : vector<8x1xf32> to vector<8x128xf32>
    %21 = arith.mulf %16, %20 : vector<8x128xf32>
    %c0_8 = arith.constant 0 : index
    %c0_9 = arith.constant 0 : index
    %c0_10 = arith.constant 0 : index
    %22 = vector.load %arg5[%c0_8, %c0_9, %c0_10] : memref<1x8x128xf32, #tpu.memory_space<vmem>>, vector<1x8x128xf32>
    %23 = vector.shape_cast %22 : vector<1x8x128xf32> to vector<8x128xf32>
    %24 = vector.shape_cast %21 : vector<8x128xf32> to vector<1x8x128xf32>
    tpu.vector_store %arg5[%c0_8, %c0_9, %c0_10], %24 {strides = array<i32>} : memref<1x8x128xf32, #tpu.memory_space<vmem>>, vector<1x8x128xf32>,
    return
  }
  func.func @transform_0(%arg0: i32, %arg1: i32, %arg2: memref<2xi32, #tpu.memory_space<smem>>) -> (i32, i32, i32) {
    %c0_i32 = arith.constant 0 : i32
    %c0_i32_0 = arith.constant 0 : i32
    %c0_i32_1 = arith.constant 0 : i32
    return %arg0, %c0_i32, %c0_i32_0 : i32, i32, i32
  }
  func.func @transform_1(%arg0: i32, %arg1: i32, %arg2: memref<2xi32, #tpu.memory_space<smem>>) -> (i32, i32, i32) {
    %c0_i32 = arith.constant 0 : i32
    %c0_i32_0 = arith.constant 0 : i32
    return %arg0, %arg1, %c0_i32 : i32, i32, i32
  }
  func.func @transform_2(%arg0: i32, %arg1: i32, %arg2: memref<2xi32, #tpu.memory_space<smem>>) -> (i32, i32, i32) {
    %c0_i32 = arith.constant 0 : i32
    %c0_i32_0 = arith.constant 0 : i32
    return %arg0, %arg1, %c0_i32 : i32, i32, i32
  }
}

</mosaic_0001>

<llo_original>
// kernel: tpu_custom_call.1
$region0: #{tpu_custom_call.1}
  #allocation0 [shape = 'u32[]', space=smem, size = 0x4, offset = 0x4, fixed_abs, tag = 'smem constant byte address 0x4 - core index']
  #allocation1 [shape = 'u32[72,128]{1,0:T(1,128)}', space=vmem, size = 0x9000, scoped, tag = 'internal scratch']
  #allocation2 [shape = 's32[1]{0}', space=sflag, size = 0x4, scoped, tag = 'scoped memory for tpu_custom_call.1']
  #allocation3 [shape = 'u8[512]{0}', space=smem, size = 0x200, scoped, tag = 'prefetched SMEM operand 0']
  %s0 = inlined_call_operand.hbm [shape: s32[2], index: 0, kind: input, shape index: {}]
  %s1 = inlined_call_operand.hbm [shape: f32[2,128,128], index: 1, kind: input, shape index: {}]
  %s2 = inlined_call_operand.hbm [shape: f32[2,8,128], index: 2, kind: input, shape index: {}]
  %s3 = inlined_call_operand.hbm [shape: f32[2,8,128], index: 3, kind: output, shape index: {}]
  %s4 = sld [smem:[#allocation0]]
  $region49: #{tpu_custom_call.1} parent=0
    _
  %s6 = ssub.s32 1, %s4
  %s7 = scalar_select 0, %s6, %s4
  %s9 = sshll.u32 %s0, 4
  %s10 = int_to_ptr.hbm [resolvable:$true] %s9
  %12 = dma.hbm_to_smem %s10, 16, [#allocation3], [#allocation2]
  %14 = dma.done [#allocation2], 16
  %15 = sfence
  $region1: #{tpu_custom_call.1} parent=0
    #allocation4 [shape = 'u8[131072]{0}', space=vmem, size = 0x20000, scoped, tag = 'input window, operand 1']
    #allocation5 [shape = 's32[2]{0}', space=sflag, size = 0x8, scoped, tag = 'scoped memory for tpu_custom_call.1']
    #allocation6 [shape = 's32[2]{0}', space=sflag, size = 0x8, scoped, tag = 'scoped memory for tpu_custom_call.1']
    #allocation7 [shape = 'u8[8192]{0}', space=vmem, size = 0x2000, scoped, tag = 'input window, operand 2']
    #allocation8 [shape = 's32[2]{0}', space=sflag, size = 0x8, scoped, tag = 'scoped memory for tpu_custom_call.1']
    #allocation9 [shape = 'u8[8192]{0}', space=vmem, size = 0x2000, scoped, tag = 'output window, operand 0']
    %16 = vsyncpa [#allocation5], 0
    %s17 = scalar_lea.sflag [#allocation5], 1
    %18 = vsyncpa %s17, 0
    %19 = vsyncpa [#allocation8], 0
    %s20 = scalar_lea.sflag [#allocation8], 1
    %21 = vsyncpa %s20, 0
    %22 = vsyncpa [#allocation6], 0
    %s23 = scalar_lea.sflag [#allocation6], 1
    %24 = vsyncpa %s23, 0
    loop: start=0, step=1, limit=4
    $region2: #{tpu_custom_call.1} parent=1 // loop_pre_header
      _
    $region3: #{tpu_custom_call.1} parent=1 // loop_header
      %s26 = sphi 0, %s30
      %p27 = scmp.ge.s32.totalorder %s26, 4
      %s33 = sphi 0, %s45
      %s34 = sphi 0, %s41
      %s35 = sphi 0, %s33
      %s36 = sphi 0, %s34
      %s37 = sphi 0, %s35
      %s38 = sphi 0, %s36
      %s48 = sphi 0, %s50
      %s51 = sphi 0, %s48
      %s52 = sphi 0, %s51
      %s68 = sphi 0, %s52
      %s76 = sphi 0, %s78
      %s79 = sphi 0, %s76
      %s80 = sphi 0, %s79
      %s96 = sphi 0, %s80
      %s104 = sphi 0, %s106
      %s107 = sphi 0, %s104
      %s108 = sphi 0, %s107
      %s124 = sphi 0, %s108
    $region4: #{tpu_custom_call.1} parent=1 // loop_header_branch
      %29 = sbr.rel (%p27) target = $region8
    $region5: #{tpu_custom_call.1} parent=1 // loop_body
      %s31 = ssub.s32 %s26, 1
      %s32 = ssub.s32 %s26, 2
      %s39 = sadd.s32 1, %s34
      %p40 = scmp.ge.s32.totalorder %s39, 1
      %s41 = scalar_select %p40, 0, %s39
      %s42 = sadd.s32 1, %s33
      %s43 = scalar_select %p40, %s42, %s33
      %p44 = scmp.ge.s32.totalorder %s43, 2
      %s45 = scalar_select %p44, 0, %s43
      %s46 = ssub.s32 %s33, %s45
      %p47 = scmp.eq.s32.totalorder %s46, 0
      %s49 = sadd.s32 %s48, 1
      %s50 = scalar_select %p47, %s48, %s49
      %p53 = pneg %p47
      %p54 = scmp.eq.s32.totalorder %s26, 1
      %p55 = por %p53, %p54
      %p56 = scmp.ne.s32.totalorder %s48, %s51
      %p57 = scmp.eq.s32.totalorder %s26, 0
      %p58 = por %p56, %p57
      %p59 = scmp.ne.s32.totalorder %s48, %s51
      %p60 = scmp.eq.s32.totalorder %s31, 1
      %p61 = por %p59, %p60
      %p62 = scmp.ne.s32.totalorder %s51, %s52
      %p63 = scmp.eq.s32.totalorder %s31, 0
      %p64 = por %p62, %p63
      %p65 = scmp.ne.s32.totalorder %s51, %s52
      %p66 = scmp.eq.s32.totalorder %s32, 1
      %p67 = por %p65, %p66
      %p69 = scmp.ne.s32.totalorder %s52, %s68
      %p70 = scmp.eq.s32.totalorder %s32, 0
      %p71 = por %p69, %p70
      %s72 = ssub.s32 %s33, %s45
      %s73 = ssub.s32 %s34, %s41
      %s74 = sor.u32 %s72, %s73
      %p75 = scmp.eq.s32.totalorder %s74, 0
      %s77 = sadd.s32 %s76, 1
      %s78 = scalar_select %p75, %s76, %s77
      %p81 = pneg %p75
      %p82 = scmp.eq.s32.totalorder %s26, 1
      %p83 = por %p81, %p82
      %p84 = scmp.ne.s32.totalorder %s76, %s79
      %p85 = scmp.eq.s32.totalorder %s26, 0
      %p86 = por %p84, %p85
      %p87 = scmp.ne.s32.totalorder %s76, %s79
      %p88 = scmp.eq.s32.totalorder %s31, 1
      %p89 = por %p87, %p88
      %p90 = scmp.ne.s32.totalorder %s79, %s80
      %p91 = scmp.eq.s32.totalorder %s31, 0
      %p92 = por %p90, %p91
      %p93 = scmp.ne.s32.totalorder %s79, %s80
      %p94 = scmp.eq.s32.totalorder %s32, 1
      %p95 = por %p93, %p94
      %p97 = scmp.ne.s32.totalorder %s80, %s96
      %p98 = scmp.eq.s32.totalorder %s32, 0
      %p99 = por %p97, %p98
      %s100 = ssub.s32 %s33, %s45
      %s101 = ssub.s32 %s34, %s41
      %s102 = sor.u32 %s100, %s101
      %p103 = scmp.eq.s32.totalorder %s102, 0
      %s105 = sadd.s32 %s104, 1
      %s106 = scalar_select %p103, %s104, %s105
      %p109 = pneg %p103
      %p110 = scmp.eq.s32.totalorder %s26, 1
      %p111 = por %p109, %p110
      %p112 = scmp.ne.s32.totalorder %s104, %s107
      %p113 = scmp.eq.s32.totalorder %s26, 0
      %p114 = por %p112, %p113
      %p115 = scmp.ne.s32.totalorder %s104, %s107
      %p116 = scmp.eq.s32.totalorder %s31, 1
      %p117 = por %p115, %p116
      %p118 = scmp.ne.s32.totalorder %s107, %s108
      %p119 = scmp.eq.s32.totalorder %s31, 0
      %p120 = por %p118, %p119
      %p121 = scmp.ne.s32.totalorder %s107, %s108
      %p122 = scmp.eq.s32.totalorder %s32, 1
      %p123 = por %p121, %p122
      %p125 = scmp.ne.s32.totalorder %s108, %s124
      %p126 = scmp.eq.s32.totalorder %s32, 0
      %p127 = por %p125, %p126
      %p128 = scmp.le.s32.totalorder 1, %s26
      %p129 = scmp.lt.s32.totalorder %s26, 3
      %p130 = pnand %p128, %p129
      %p131 = pneg %p130
      // Predicated region
      $region9: #{tpu_custom_call.1} parent=5 // pred_check
        _
      $region10: #{tpu_custom_call.1} parent=5 // pred_check_branch
        %133 = sbr.rel (%p130) target = $region12
      $region11: #{tpu_custom_call.1} parent=5 // pred_region
        %s134 = ssub.s32 %s26, 1
      $region12: #{tpu_custom_call.1} parent=5 // pred_fallthru
        _
      %p135 = scmp.lt.s32.totalorder %s26, 2
      // Predicated region
      $region13: #{tpu_custom_call.1} parent=5 // pred_check
        %p136 = pneg %p135
      $region14: #{tpu_custom_call.1} parent=5 // pred_check_branch
        %138 = sbr.rel (%p136) target = $region16
      $region15: #{tpu_custom_call.1} parent=5 // pred_region
        // Predicated region
        $region17: #{tpu_custom_call.1} parent=15 // pred_check
          %p139 = pneg %p58
        $region18: #{tpu_custom_call.1} parent=15 // pred_check_branch
          %141 = sbr.rel (%p139) target = $region20
        $region19: #{tpu_custom_call.1} parent=15 // pred_region
          %s142 = sand.u32 %s48, 1
          %s143 = scalar_lea.sflag [#allocation5], %s142
          %s144 = sand.u32 %s48, 1
          %s145 = smul.addr %s144, 128
          %s146 = scalar_lea.vmem [#allocation4], %s145
          %148 = vsyncadd %s143, 0
          %s149 = smul.addr %s33, 16
          %s150 = smul.addr %s149, 8
          %s151 = scalar_lea.hbm %s1, %s150
          %s152 = sshll.u32 %s151, 4
          %s153 = int_to_ptr.hbm [resolvable:$true] %s152
          %s154 = sshll.u32 %s146, 4
          %s155 = int_to_ptr.vmem [resolvable:$true] %s154
          %160 = dma.hbm_to_vmem [thread:$0]  %s153, 2048, %s155, %s143, 128, 128, 8
        $region20: #{tpu_custom_call.1} parent=15 // pred_fallthru
          _
        // Predicated region
        $region21: #{tpu_custom_call.1} parent=15 // pred_check
          %p161 = pneg %p86
        $region22: #{tpu_custom_call.1} parent=15 // pred_check_branch
          %163 = sbr.rel (%p161) target = $region24
        $region23: #{tpu_custom_call.1} parent=15 // pred_region
          %s164 = sand.u32 %s76, 1
          %s165 = scalar_lea.sflag [#allocation8], %s164
          %s166 = sand.u32 %s76, 1
          %s167 = smul.addr %s166, 8
          %s168 = scalar_lea.vmem [#allocation7], %s167
          %170 = vsyncadd %s165, 0
          %s171 = sadd.s32 %s34, %s33
          %s172 = smul.addr %s171, 8
          %s173 = scalar_lea.hbm %s2, %s172
          %s175 = sshll.u32 %s173, 4
          %s176 = int_to_ptr.hbm [resolvable:$true] %s175
          %s177 = sshll.u32 %s168, 4
          %s178 = int_to_ptr.vmem [resolvable:$true] %s177
          %180 = dma.hbm_to_vmem [thread:$0]  %s176, 128, %s178, %s165
        $region24: #{tpu_custom_call.1} parent=15 // pred_fallthru
          _
      $region16: #{tpu_custom_call.1} parent=5 // pred_fallthru
        _
      %p181 = scmp.le.s32.totalorder 1, %s26
      %p182 = scmp.lt.s32.totalorder %s26, 3
      %p183 = pnand %p181, %p182
      %p184 = pneg %p183
      // Predicated region
      $region25: #{tpu_custom_call.1} parent=5 // pred_check
        _
      $region26: #{tpu_custom_call.1} parent=5 // pred_check_branch
        %186 = sbr.rel (%p183) target = $region28
      $region27: #{tpu_custom_call.1} parent=5 // pred_region
        %s187 = ssub.s32 %s26, 1
        %s188 = sand.u32 %s51, 1
        %s189 = scalar_lea.sflag [#allocation5], %s188
        %s190 = sand.u32 %s51, 1
        %s191 = smul.addr %s190, 128
        %s192 = scalar_lea.vmem [#allocation4], %s191
        // Predicated region
        $region29: #{tpu_custom_call.1} parent=27 // pred_check
          %p193 = pneg %p64
        $region30: #{tpu_custom_call.1} parent=27 // pred_check_branch
          %195 = sbr.rel (%p193) target = $region32
        $region31: #{tpu_custom_call.1} parent=27 // pred_region
          %197 = dma.done %s189, 2048
        $region32: #{tpu_custom_call.1} parent=27 // pred_fallthru
          _
        %s198 = sand.u32 %s79, 1
        %s199 = scalar_lea.sflag [#allocation8], %s198
        %s200 = sand.u32 %s79, 1
        %s201 = smul.addr %s200, 8
        %s202 = scalar_lea.vmem [#allocation7], %s201
        // Predicated region
        $region33: #{tpu_custom_call.1} parent=27 // pred_check
          %p203 = pneg %p92
        $region34: #{tpu_custom_call.1} parent=27 // pred_check_branch
          %205 = sbr.rel (%p203) target = $region36
        $region35: #{tpu_custom_call.1} parent=27 // pred_region
          %207 = dma.done %s199, 128
        $region36: #{tpu_custom_call.1} parent=27 // pred_fallthru
          _
        %s208 = sand.u32 %s51, 1
        %s209 = scalar_lea.sflag [#allocation5], %s208
        %s210 = sand.u32 %s51, 1
        %s211 = smul.addr %s210, 128
        %s212 = scalar_lea.vmem [#allocation4], %s211
        %p213 = pneg %p64
        %p214 = pneg %p61
        %s215 = sand.u32 %s79, 1
        %s216 = scalar_lea.sflag [#allocation8], %s215
        %s217 = sand.u32 %s79, 1
        %s218 = smul.addr %s217, 8
        %s219 = scalar_lea.vmem [#allocation7], %s218
        %p220 = pneg %p92
        %p221 = pneg %p89
        %p222 = pneg %p120
        %p223 = pneg %p117
        %s224 = sand.u32 %s107, 1
        %s225 = scalar_lea.sflag [#allocation6], %s224
        %s226 = sand.u32 %s107, 1
        %s227 = smul.addr %s226, 8
        %s228 = scalar_lea.vmem [#allocation9], %s227
        %v229 = vld [vmem:[%s192] sm:$0xff]
        %v230 = vld [vmem:[%s192 + $0x8] sm:$0xff]
        %v231 = vld [vmem:[%s192 + $0x10] sm:$0xff]
        %v232 = vld [vmem:[%s192 + $0x18] sm:$0xff]
        %v233 = vld [vmem:[%s192 + $0x20] sm:$0xff]
        %v234 = vld [vmem:[%s192 + $0x28] sm:$0xff]
        %v235 = vld [vmem:[%s192 + $0x30] sm:$0xff]
        %v236 = vld [vmem:[%s192 + $0x38] sm:$0xff]
        %v237 = vld [vmem:[%s192 + $0x40] sm:$0xff]
        %v238 = vld [vmem:[%s192 + $0x48] sm:$0xff]
        %v239 = vld [vmem:[%s192 + $0x50] sm:$0xff]
        %v240 = vld [vmem:[%s192 + $0x58] sm:$0xff]
        %v241 = vld [vmem:[%s192 + $0x60] sm:$0xff]
        %v242 = vld [vmem:[%s192 + $0x68] sm:$0xff]
        %v243 = vld [vmem:[%s192 + $0x70] sm:$0xff]
        %v244 = vld [vmem:[%s192 + $0x78] sm:$0xff]
        %v245 = vld [vmem:[%s202] sm:$0xff]
        %246 = vmatpush.xpose.msra.mxu0 %v244
        %247 = vmatpush.xpose.msra.mxu0 %v243
        %248 = vmatpush.xpose.msra.mxu0 %v242
        %249 = vmatpush.xpose.msra.mxu0 %v241
        %250 = vmatpush.xpose.msra.mxu0 %v240
        %251 = vmatpush.xpose.msra.mxu0 %v239
        %252 = vmatpush.xpose.msra.mxu0 %v238
        %253 = vmatpush.xpose.msra.mxu0 %v237
        %254 = vmatpush.xpose.msra.mxu0 %v236
        %255 = vmatpush.xpose.msra.mxu0 %v235
        %256 = vmatpush.xpose.msra.mxu0 %v234
        %257 = vmatpush.xpose.msra.mxu0 %v233
        %258 = vmatpush.xpose.msra.mxu0 %v232
        %259 = vmatpush.xpose.msra.mxu0 %v231
        %260 = vmatpush.xpose.msra.mxu0 %v230
        %261 = vmatpush.xpose.msra.mxu0 %v229
        %262 = vmatmul.f32.gmra.mxu0 %v245
        %v263 = vpop.f32.mrf.mxu0
        %v264 = vadd.f32 0.0, %v263
        %265 = vdwg.mxu0
        %s266 = sld [smem:[#allocation3 + %s35]]
        %v267 = vlaneseq
        %v268 = vand.u32 %v267, 127
        %v269 = vstv %s266
        %vm270 = vcmp.lt.s32.totalorder %v268, %v269
        %v271 = vsel %vm270, %v264, -1e+08
        %272 = vmax.xlane.f32.xlu0 %v271
        %v273 = vpop.xlane.xlu0 %272
        %v274 = vsub.f32 %v271, %v273
        %v275 = vmul.f32 %v274, 1.442695
        %v276 = vpow.pop %v275
        %277 = vadd.xlane.f32.xlu0 %v276
        %v278 = vpop.xlane.xlu0 %277
        %v279 = vrcp.pop %v278
        %v280 = vmul.f32 %v278, %v279
        %v281 = vsub.f32 1.0, %v280
        %v282 = vmul.f32 %v279, %v281
        %v283 = vadd.f32 %v279, %v282
        %vm284 = vweird.f32 %v278
        %vm285 = vweird.f32 %v279
        %vm286 = vmor %vm284, %vm285
        %v287 = vsel %vm286, %v279, %v283
        %v288 = vand.u32 2147483647, %v278
        %vm289 = vcmp.eq.f32.partialorder %v288, 8.507059e+37
        %v290 = vand.u32 %v278, 2147483648
        %v291 = vor.u32 1.1754944e-38, %v290
        %v292 = vsel %vm289, %v291, %v287
        %v293 = vmul.f32 %v276, %v292
        %294 = vst [vmem:[%s228] sm:$0xff] %v293
        %s295 = sand.u32 %s107, 1
        %s296 = scalar_lea.sflag [#allocation6], %s295
        %s297 = sand.u32 %s107, 1
        %s298 = smul.addr %s297, 8
        %s299 = scalar_lea.vmem [#allocation9], %s298
        // Predicated region
        $region37: #{tpu_custom_call.1} parent=27 // pred_check
          %p300 = pneg %p117
        $region38: #{tpu_custom_call.1} parent=27 // pred_check_branch
          %302 = sbr.rel (%p300) target = $region40
        $region39: #{tpu_custom_call.1} parent=27 // pred_region
          %304 = vsyncadd %s296, 0
          %s305 = sadd.s32 %s36, %s35
          %s306 = smul.addr %s305, 8
          %s307 = scalar_lea.hbm %s3, %s306
          %s309 = sshll.u32 %s299, 4
          %s310 = int_to_ptr.vmem [resolvable:$true] %s309
          %s311 = sshll.u32 %s307, 4
          %s312 = int_to_ptr.hbm [resolvable:$true] %s311
          %314 = dma.vmem_to_hbm [thread:$0]  %s310, 128, %s312, %s296
        $region40: #{tpu_custom_call.1} parent=27 // pred_fallthru
          _
      $region28: #{tpu_custom_call.1} parent=5 // pred_fallthru
        _
      %p315 = scmp.le.s32.totalorder 2, %s26
      // Predicated region
      $region41: #{tpu_custom_call.1} parent=5 // pred_check
        %p316 = pneg %p315
      $region42: #{tpu_custom_call.1} parent=5 // pred_check_branch
        %318 = sbr.rel (%p316) target = $region44
      $region43: #{tpu_custom_call.1} parent=5 // pred_region
        %s319 = ssub.s32 %s26, 2
        // Predicated region
        $region45: #{tpu_custom_call.1} parent=43 // pred_check
          %p320 = pneg %p123
        $region46: #{tpu_custom_call.1} parent=43 // pred_check_branch
          %322 = sbr.rel (%p320) target = $region48
        $region47: #{tpu_custom_call.1} parent=43 // pred_region
          %s323 = sand.u32 %s108, 1
          %s324 = scalar_lea.sflag [#allocation6], %s323
          %s325 = sand.u32 %s108, 1
          %s326 = smul.addr %s325, 8
          %s327 = scalar_lea.vmem [#allocation9], %s326
          %329 = dma.done %s324, 128
        $region48: #{tpu_custom_call.1} parent=43 // pred_fallthru
          _
      $region44: #{tpu_custom_call.1} parent=5 // pred_fallthru
        _
    $region6: #{tpu_custom_call.1} parent=1 // loop_footer
      %s30 = sadd.s32 1, %s26
    $region7: #{tpu_custom_call.1} parent=1 // loop_footer_branch
      %25 = sbr.rel target = $region3
    $region8: #{tpu_custom_call.1} parent=1 // loop_exit
      _
    %330 = vsyncpa [#allocation5], 1
    %s331 = scalar_lea.sflag [#allocation5], 1
    %332 = vsyncpa %s331, 1
    %333 = vsyncpa [#allocation8], 1
    %s334 = scalar_lea.sflag [#allocation8], 1
    %335 = vsyncpa %s334, 1
    %336 = vsyncpa [#allocation6], 1
    %s337 = scalar_lea.sflag [#allocation6], 1
    %338 = vsyncpa %s337, 1

</llo_original>
